<compile_context>
chip_gen: v5e
topology: v5e:2x2
jax: 0.10.0
libtpu: 0.0.40
codegen_flags: <defaults>
</compile_context>

<pallas_src>
import functools
import math

import jax
import jax.numpy as jnp
from jax import lax
from jax.experimental import pallas as pl
from jax.experimental.pallas import tpu as pltpu
from jax.scipy.special import erf as _erf_host

# ----------------------------------------------------------------------------
# Hyperparameters from the PyTorch spec.
# ----------------------------------------------------------------------------
N_EMBD = 128
N_HEAD = 2
HASH_SIZES = (3, 4, 5)            # range(3, 6)
HASH_TABLE_SIZE = 50000
PATCH_SIZE = 4
VOCAB_SIZE = 256
L_E = 1                           # number of local-encoder transformer blocks
LN_EPS = 1e-5

TARGET_ROWS_LN = 2048             # LayerNorm-only kernel (HBM-bandwidth bound)
TARGET_ROWS_MM = 1024             # fused LN+matmul / MLP kernels


def _round_up(x: int, m: int) -> int:
    return ((x + m - 1) // m) * m


def _tiling(rows: int, target: int):
    """Balanced row tiling: tile is a multiple of 8, padding stays tiny."""
    rows8 = _round_up(max(int(rows), 1), 8)
    target = max(8, (int(target) // 8) * 8)
    n_tiles = max(1, -(-rows8 // target))
    tile = _round_up(-(-rows8 // n_tiles), 8)
    padded = tile * n_tiles
    return tile, padded, n_tiles


@functools.lru_cache(maxsize=None)
def _vmem_limit():
    """Scoped VMEM limit, clamped to a per-TensorCore-safe value.

    v7x has 64 MiB per TC and get_tpu_info may report per-chip capacity, so
    never request more than 48 MiB of scoped VMEM.
    """
    try:
        cap = int(pltpu.get_tpu_info().vmem_capacity_bytes)
    except Exception:
        cap = 64 * 1024 * 1024
    return min((cap * 3) // 4, 48 * 1024 * 1024)


# ----------------------------------------------------------------------------
# Kernel bodies.  Convention: row-tiled refs first, then resident (per-call)
# weight refs, then outputs.  All matmul operands are cast to bf16 (f32 acc).
# ----------------------------------------------------------------------------
def _ln_body(x, w_ref, b_ref):
    mean = jnp.mean(x, axis=-1, keepdims=True)
    c = x - mean
    var = jnp.mean(c * c, axis=-1, keepdims=True)
    return (c * lax.rsqrt(var + LN_EPS) * w_ref[...].astype(jnp.float32)
            + b_ref[...].astype(jnp.float32))


def _layernorm_kernel(x_ref, w_ref, b_ref, o_ref):
    x = x_ref[...].astype(jnp.float32)
    o_ref[...] = _ln_body(x, w_ref, b_ref).astype(o_ref.dtype)


def _ln_linear_kernel(x_ref, lnw_ref, lnb_ref, w_ref, b_ref, o_ref):
    x = x_ref[...].astype(jnp.float32)
    h = _ln_body(x, lnw_ref, lnb_ref)
    y = jnp.dot(h.astype(jnp.bfloat16), w_ref[...],
                preferred_element_type=jnp.float32)
    o_ref[...] = (y + b_ref[...].astype(jnp.float32)).astype(o_ref.dtype)


def _ln_linear_keep_kernel(x_ref, lnw_ref, lnb_ref, w_ref, b_ref, h_ref, o_ref):
    x = x_ref[...].astype(jnp.float32)
    h = _ln_body(x, lnw_ref, lnb_ref)
    y = jnp.dot(h.astype(jnp.bfloat16), w_ref[...],
                preferred_element_type=jnp.float32)
    h_ref[...] = h.astype(h_ref.dtype)
    o_ref[...] = (y + b_ref[...].astype(jnp.float32)).astype(o_ref.dtype)


def _ln_qkv_kernel(x_ref, lnw_ref, lnb_ref, w_ref, b_ref, q_ref, kv_ref):
    x = x_ref[...].astype(jnp.float32)
    h = _ln_body(x, lnw_ref, lnb_ref)
    y = jnp.dot(h.astype(jnp.bfloat16), w_ref[...],
                preferred_element_type=jnp.float32)
    y = y + b_ref[...].astype(jnp.float32)
    q_ref[...] = y[:, :N_EMBD].astype(q_ref.dtype)       # lane-aligned split
    kv_ref[...] = y[:, N_EMBD:].astype(kv_ref.dtype)


def _linear_residual_kernel(x_ref, r_ref, w_ref, b_ref, o_ref):
    y = jnp.dot(x_ref[...].astype(jnp.bfloat16), w_ref[...],
                preferred_element_type=jnp.float32)
    y = y + b_ref[...].astype(jnp.float32)
    o_ref[...] = (r_ref[...].astype(jnp.float32) + y).astype(o_ref.dtype)


def _double_linear_residual_kernel(x_ref, r_ref, w1_ref, b1_ref,
                                   w2_ref, b2_ref, o_ref):
    y1 = jnp.dot(x_ref[...].astype(jnp.bfloat16), w1_ref[...],
                 preferred_element_type=jnp.float32)
    y1 = y1 + b1_ref[...].astype(jnp.float32)
    y2 = jnp.dot(y1.astype(jnp.bfloat16), w2_ref[...],
                 preferred_element_type=jnp.float32)
    y2 = y2 + b2_ref[...].astype(jnp.float32)
    o_ref[...] = (r_ref[...].astype(jnp.float32) + y2).astype(o_ref.dtype)


def _mlp_kernel(x_ref, lnw_ref, lnb_ref, w1_ref, b1_ref, w2_ref, b2_ref, o_ref):
    """x + FC2(GELU_exact(FC1(LN(x)))); LN2/FC1/GELU/FC2/residual fused."""
    x = x_ref[...].astype(jnp.float32)
    h = _ln_body(x, lnw_ref, lnb_ref)
    h1 = jnp.dot(h.astype(jnp.bfloat16), w1_ref[...],
                 preferred_element_type=jnp.float32)
    h1 = h1 + b1_ref[...].astype(jnp.float32)
    # Exact (erf-based) GELU, matching torch.nn.GELU().
    h1 = 0.5 * h1 * (1.0 + lax.erf(h1 * (1.0 / math.sqrt(2.0))))
    y = jnp.dot(h1.astype(jnp.bfloat16), w2_ref[...],
                preferred_element_type=jnp.float32)
    y = y + b2_ref[...].astype(jnp.float32)
    o_ref[...] = (x + y).astype(o_ref.dtype)


def _make_attention_kernel(n_head, dh, scale):
    """Per-batch attention: both heads inside one step, lane-dense output."""
    def kernel(q_ref, kv_ref, o_ref):
        q = q_ref[0].astype(jnp.float32)        # (Tq, n_head*dh)
        kv = kv_ref[0].astype(jnp.float32)      # (Tk, 2*n_head*dh) = [K | V]
        outs = []
        for h in range(n_head):                 # static 2-iteration loop
            qh = (q[:, h * dh:(h + 1) * dh] * scale).astype(jnp.bfloat16)
            kh = kv[:, h * dh:(h + 1) * dh].astype(jnp.bfloat16)
            vh = kv[:, n_head * dh + h * dh:
                       n_head * dh + (h + 1) * dh].astype(jnp.bfloat16)
            s = lax.dot_general(qh, kh, (((1,), (1,)), ((), ())),
                                preferred_element_type=jnp.float32)  # (Tq, Tk)
            s = s - jnp.max(s, axis=-1, keepdims=True)
            p = jnp.exp(s)
            l = jnp.sum(p, axis=-1, keepdims=True)
            o = jnp.dot(p.astype(jnp.bfloat16), vh,
                        preferred_element_type=jnp.float32)          # (Tq, dh)
            # Deferred softmax normalization on the (Tq, dh) output via EUP.
            outs.append(o * pl.reciprocal(l, approx=True))
        o_ref[0] = jnp.concatenate(outs, axis=-1).astype(o_ref.dtype)
    return kernel


# ----------------------------------------------------------------------------
# Generic row-tiled pallas_call wrapper.
# ----------------------------------------------------------------------------
def _row_call(kernel, row_inputs, const_inputs, out_widths, *,
              target_rows, flops=0, transcendentals=0):
    rows = row_inputs[0].shape[0]
    dtype = row_inputs[0].dtype
    tile, padded, n_tiles = _tiling(rows, target_rows)

    padded_inputs = []
    for a in row_inputs:
        if padded != rows:
            a = jnp.pad(a, ((0, padded - rows), (0, 0)))
        padded_inputs.append(a)

    in_specs = ([pl.BlockSpec((tile, a.shape[1]), lambda i: (i, 0))
                 for a in row_inputs]
                + [pl.BlockSpec(c.shape, lambda i: (0, 0))
                   for c in const_inputs])
    out_specs = tuple(pl.BlockSpec((tile, w), lambda i: (i, 0))
                      for w in out_widths)
    out_shape = tuple(jax.ShapeDtypeStruct((padded, w), dtype)
                      for w in out_widths)

    itemsize = jnp.dtype(dtype).itemsize
    bytes_accessed = int(
        sum(rows * a.shape[1] * a.dtype.itemsize for a in row_inputs)
        + sum(c.size * c.dtype.itemsize for c in const_inputs)
        + sum(rows * w * itemsize for w in out_widths))
    cost = pl.CostEstimate(flops=int(flops),
                           transcendentals=int(transcendentals),
                           bytes_accessed=bytes_accessed)

    outs = pl.pallas_call(
        kernel,
        out_shape=out_shape,
        grid_spec=pltpu.PrefetchScalarGridSpec(
            num_scalar_prefetch=0,
            grid=(n_tiles,),
            in_specs=in_specs,
            out_specs=out_specs,
        ),
        compiler_params=pltpu.CompilerParams(
            dimension_semantics=("parallel",),
            vmem_limit_bytes=_vmem_limit(),
        ),
        cost_estimate=cost,
    )(*padded_inputs, *const_inputs)
    if not isinstance(outs, (tuple, list)):
        outs = (outs,)
    return tuple(o[:rows] for o in outs)


# ----------------------------------------------------------------------------
# Public kernel wrappers (arbitrary leading dims, last dim is the feature dim).
# ----------------------------------------------------------------------------
def layer_norm(x, weight, bias):
    shape = x.shape
    h = shape[-1]
    rows = math.prod(shape[:-1]) if len(shape) > 1 else 1
    (out,) = _row_call(
        _layernorm_kernel,
        [x.reshape(rows, h)],
        [weight.reshape(1, h), bias.reshape(1, h)],
        [h], target_rows=TARGET_ROWS_LN,
        flops=8 * rows * h, transcendentals=rows)
    return out.reshape(shape)


def ln_linear(x, ln_w, ln_b, w, b):
    shape = x.shape
    e = shape[-1]
    n = w.shape[1]
    rows = math.prod(shape[:-1])
    (out,) = _row_call(
        _ln_linear_kernel,
        [x.reshape(rows, e)],
        [ln_w.reshape(1, e), ln_b.reshape(1, e),
         w.astype(jnp.bfloat16), b.reshape(1, n)],
        [n], target_rows=TARGET_ROWS_MM,
        flops=2 * rows * e * n, transcendentals=rows)
    return out.reshape(shape[:-1] + (n,))


def ln_linear_keep(x, ln_w, ln_b, w, b):
    """Returns (LN(x), LN(x) @ w + b); the LN output feeds a later residual."""
    shape = x.shape
    e = shape[-1]
    n = w.shape[1]
    rows = math.prod(shape[:-1])
    h, y = _row_call(
        _ln_linear_keep_kernel,
        [x.reshape(rows, e)],
        [ln_w.reshape(1, e), ln_b.reshape(1, e),
         w.astype(jnp.bfloat16), b.reshape(1, n)],
        [e, n], target_rows=TARGET_ROWS_MM,
        flops=2 * rows * e * n, transcendentals=rows)
    return h.reshape(shape), y.reshape(shape[:-1] + (n,))


def ln_qkv(x, ln_w, ln_b, w_qkv, b_qkv):
    """Fused LN1 + QKV projection -> (Q: ...x128, KV: ...x256 [K|V])."""
    shape = x.shape
    e = shape[-1]
    rows = math.prod(shape[:-1])
    q, kv = _row_call(
        _ln_qkv_kernel,
        [x.reshape(rows, e)],
        [ln_w.reshape(1, e), ln_b.reshape(1, e),
         w_qkv.astype(jnp.bfloat16), b_qkv.reshape(1, 3 * e)],
        [e, 2 * e], target_rows=TARGET_ROWS_MM,
        flops=2 * rows * e * 3 * e, transcendentals=rows)
    return q.reshape(shape), kv.reshape(shape[:-1] + (2 * e,))


def linear_residual(x, resid, w, b):
    shape = resid.shape
    e = shape[-1]
    k = x.shape[-1]
    rows = math.prod(shape[:-1])
    (out,) = _row_call(
        _linear_residual_kernel,
        [x.reshape(rows, k), resid.reshape(rows, e)],
        [w.astype(jnp.bfloat16), b.reshape(1, e)],
        [e], target_rows=TARGET_ROWS_MM,
        flops=2 * rows * k * e)
    return out.reshape(shape)


def double_linear_residual(x, resid, w1, b1, w2, b2):
    shape = resid.shape
    e = shape[-1]
    k = x.shape[-1]
    n1 = w1.shape[1]
    rows = math.prod(shape[:-1])
    (out,) = _row_call(
        _double_linear_residual_kernel,
        [x.reshape(rows, k), resid.reshape(rows, e)],
        [w1.astype(jnp.bfloat16), b1.reshape(1, n1),
         w2.astype(jnp.bfloat16), b2.reshape(1, e)],
        [e], target_rows=TARGET_ROWS_MM,
        flops=2 * rows * (k * n1 + n1 * e))
    return out.reshape(shape)


def _erf_probe_kernel(x_ref, o_ref):
    o_ref[...] = lax.erf(x_ref[...])


@functools.lru_cache(maxsize=None)
def _erf_lowers_in_kernel():
    """One-time probe: can Mosaic lower lax.erf (needed for in-kernel GELU)?"""
    try:
        x = jnp.linspace(-3.0, 3.0, 8 * 128, dtype=jnp.float32).reshape(8, 128)
        out = pl.pallas_call(
            _erf_probe_kernel,
            out_shape=jax.ShapeDtypeStruct((8, 128), jnp.float32),
        )(x)
        out = jax.block_until_ready(out)
        return bool(jnp.allclose(out, _erf_host(x), atol=1e-4, rtol=1e-4))
    except Exception:
        return False


def mlp_block(x, ln_w, ln_b, w1, b1, w2, b2):
    """x + FC2(GELU(FC1(LN2(x)))) with dropout omitted (eval mode)."""
    if _erf_lowers_in_kernel():
        shape = x.shape
        e = shape[-1]
        f = w1.shape[1]
        rows = math.prod(shape[:-1])
        (out,) = _row_call(
            _mlp_kernel,
            [x.reshape(rows, e)],
            [ln_w.reshape(1, e), ln_b.reshape(1, e),
             w1.astype(jnp.bfloat16), b1.reshape(1, f),
             w2.astype(jnp.bfloat16), b2.reshape(1, e)],
            [e], target_rows=TARGET_ROWS_MM,
            flops=4 * rows * e * f, transcendentals=rows * (f + 1))
        return out.reshape(shape)
    # TODO(synk): erf does not lower in-kernel on this backend; exact GELU runs
    # at the JAX level between the fused LN2+FC1 kernel and FC2+residual kernel.
    h = ln_linear(x, ln_w, ln_b, w1, b1)
    h = jax.nn.gelu(h, approximate=False)
    return linear_residual(h, x, w2, b2)


def attention_heads(q, kv):
    """softmax((q k^T)/sqrt(dh)) v for both heads, per-batch grid step."""
    B, Tq, E = q.shape
    Tk = kv.shape[1]
    dh = E // N_HEAD
    scale = 1.0 / math.sqrt(dh)
    # TODO(synk): whole-sequence K/V per batch; for very long byte sequences
    # (esp. v7x with 64 MiB VMEM/TC) this should become a flash-style Tk-tiled
    # online-softmax kernel.
    return pl.pallas_call(
        _make_attention_kernel(N_HEAD, dh, scale),
        out_shape=jax.ShapeDtypeStruct((B, Tq, E), q.dtype),
        grid_spec=pltpu.PrefetchScalarGridSpec(
            num_scalar_prefetch=0,
            grid=(B,),
            in_specs=[
                pl.BlockSpec((1, Tq, E), lambda i: (i, 0, 0)),
                pl.BlockSpec((1, Tk, 2 * E), lambda i: (i, 0, 0)),
            ],
            out_specs=pl.BlockSpec((1, Tq, E), lambda i: (i, 0, 0)),
        ),
        compiler_params=pltpu.CompilerParams(
            dimension_semantics=("parallel",),
            vmem_limit_bytes=_vmem_limit(),
        ),
    )(q, kv)


# ----------------------------------------------------------------------------
# JAX-level pieces shared by the Pallas model and the reference.
# ----------------------------------------------------------------------------
def hash_ngram_embedding(tokens, hash_tables):
    """Hash n-gram embeddings (rolling polynomial hash, base 257, mod 2**32)."""
    # TODO(synk): rolling hash + embedding gathers stay at the JAX level
    # (data-dependent HBM gathers; a Pallas DMA-gather is not worth it here).
    B, T = tokens.shape
    emb = jnp.zeros((B, T, N_EMBD), dtype=jnp.float32)
    for n in HASH_SIZES:
        if T < n:
            continue
        L = T - n + 1
        h = jnp.zeros((B, L), dtype=jnp.uint32)
        for i in range(n):
            h = h * jnp.uint32(257) + tokens[:, i:i + L].astype(jnp.uint32)
        idx = (h % jnp.uint32(HASH_TABLE_SIZE)).astype(jnp.int32)
        emb = emb.at[:, n - 1:T, :].add(
            jnp.take(hash_tables[f"hash_{n}"], idx, axis=0))
    return emb / float(len(HASH_SIZES))


def _embed(tokens, params):
    x = jnp.take(params["byte_embedding"], tokens, axis=0)
    return x + hash_ngram_embedding(tokens, params["hash_tables"])


# ----------------------------------------------------------------------------
# Pallas LocalEncoder forward.
# ----------------------------------------------------------------------------
def transformer_block(x, p):
    a = p["attn"]
    w_qkv = jnp.concatenate([a["wq"], a["wk"], a["wv"]], axis=1)   # (128, 384)
    b_qkv = jnp.concatenate([a["bq"], a["bk"], a["bv"]])
    q, kv = ln_qkv(x, p["ln1_w"], p["ln1_b"], w_qkv, b_qkv)
    o = attention_heads(q, kv)                                     # (B, T, 128)
    x = linear_residual(o, x, a["wo"], a["bo"])                    # attn resid
    return mlp_block(x, p["ln2_w"], p["ln2_b"],
                     p["fc1_w"], p["fc1_b"], p["fc2_w"], p["fc2_b"])


def cross_attention_block(query, key_value, p):
    a = p["attn"]
    w_kv = jnp.concatenate([a["wk"], a["wv"]], axis=1)             # (128, 256)
    b_kv = jnp.concatenate([a["bk"], a["bv"]])
    q_norm, q_proj = ln_linear_keep(query, p["ln_q_w"], p["ln_q_b"],
                                    a["wq"], a["bq"])
    kv_proj = ln_linear(key_value, p["ln_kv_w"], p["ln_kv_b"], w_kv, b_kv)
    o = attention_heads(q_proj, kv_proj)
    # out-proj -> proj -> (+ q_norm residual), fused (dropout omitted, eval).
    return double_linear_residual(o, q_norm, a["wo"], a["bo"],
                                  p["proj_w"], p["proj_b"])


def local_encoder(tokens, params):
    B, T = tokens.shape
    x = _embed(tokens, params)
    for bp in params["blocks"]:
        x = transformer_block(x, bp)
    if T % PATCH_SIZE != 0:
        pad_len = PATCH_SIZE - T % PATCH_SIZE
        pad_tok = jnp.zeros((B, pad_len), dtype=tokens.dtype)
        x = jnp.concatenate([x, _embed(pad_tok, params)], axis=1)
        T = T + pad_len
    # TODO(synk): patch-mean pooling stays at the JAX level (tiny reduction).
    patches = x.reshape(B, T // PATCH_SIZE, PATCH_SIZE, N_EMBD).mean(axis=2)
    patches = cross_attention_block(patches, x, params["cross_attn"])
    return layer_norm(patches, params["ln_w"], params["ln_b"])


# ----------------------------------------------------------------------------
# Pure-JAX reference (mirrors the PyTorch module, f32 HIGHEST precision).
# ----------------------------------------------------------------------------
_HI = lax.Precision.HIGHEST


def _ln_ref(x, w, b):
    xf = x.astype(jnp.float32)
    mean = jnp.mean(xf, axis=-1, keepdims=True)
    c = xf - mean
    var = jnp.mean(c * c, axis=-1, keepdims=True)
    return (c * lax.rsqrt(var + LN_EPS)) * w + b


def _linear_ref(x, w, b):
    return jnp.dot(x, w, precision=_HI) + b


def _mha_ref(query, key, value, p):
    B, Tq, E = query.shape
    Tk = key.shape[1]
    dh = E // N_HEAD
    q = _linear_ref(query, p["wq"], p["bq"]).reshape(B, Tq, N_HEAD, dh)
    k = _linear_ref(key, p["wk"], p["bk"]).reshape(B, Tk, N_HEAD, dh)
    v = _linear_ref(value, p["wv"], p["bv"]).reshape(B, Tk, N_HEAD, dh)
    q, k, v = (t.transpose(0, 2, 1, 3) for t in (q, k, v))
    s = jnp.einsum("bhqd,bhkd->bhqk", q, k, precision=_HI) / math.sqrt(dh)
    a = jax.nn.softmax(s, axis=-1)
    o = jnp.einsum("bhqk,bhkd->bhqd", a, v, precision=_HI)
    o = o.transpose(0, 2, 1, 3).reshape(B, Tq, E)
    return _linear_ref(o, p["wo"], p["bo"])


def _block_ref(x, p):
    h = _ln_ref(x, p["ln1_w"], p["ln1_b"])
    x = x + _mha_ref(h, h, h, p["attn"])
    h = _ln_ref(x, p["ln2_w"], p["ln2_b"])
    h = _linear_ref(h, p["fc1_w"], p["fc1_b"])
    h = jax.nn.gelu(h, approximate=False)
    h = _linear_ref(h, p["fc2_w"], p["fc2_b"])
    return x + h


def _cross_attn_ref(query, key, value, p):
    q = _ln_ref(query, p["ln_q_w"], p["ln_q_b"])
    k = _ln_ref(key, p["ln_kv_w"], p["ln_kv_b"])
    v = _ln_ref(value, p["ln_kv_w"], p["ln_kv_b"])
    a = _mha_ref(q, k, v, p["attn"])
    a = _linear_ref(a, p["proj_w"], p["proj_b"])
    return q + a


def local_encoder_ref(tokens, params):
    B, T = tokens.shape
    x = _embed(tokens, params)
    for bp in params["blocks"]:
        x = _block_ref(x, bp)
    if T % PATCH_SIZE != 0:
        pad_len = PATCH_SIZE - T % PATCH_SIZE
        pad_tok = jnp.zeros((B, pad_len), dtype=tokens.dtype)
        x = jnp.concatenate([x, _embed(pad_tok, params)], axis=1)
        T = T + pad_len
    patches = x.reshape(B, T // PATCH_SIZE, PATCH_SIZE, N_EMBD).mean(axis=2)
    patches = _cross_attn_ref(patches, x, x, params["cross_attn"])
    return _ln_ref(patches, params["ln_w"], params["ln_b"])


# ----------------------------------------------------------------------------
# Deterministic parameter initialization.
# ----------------------------------------------------------------------------
def init_params(key):
    keys = iter(jax.random.split(key, 64))

    def nrm(shape, std=0.02):
        return std * jax.random.normal(next(keys), shape, dtype=jnp.float32)

    def zeros(n):
        return jnp.zeros((n,), dtype=jnp.float32)

    def ones(n):
        return jnp.ones((n,), dtype=jnp.float32)

    def attn_params():
        return dict(
            wq=nrm((N_EMBD, N_EMBD)), bq=zeros(N_EMBD),
            wk=nrm((N_EMBD, N_EMBD)), bk=zeros(N_EMBD),
            wv=nrm((N_EMBD, N_EMBD)), bv=zeros(N_EMBD),
            wo=nrm((N_EMBD, N_EMBD)), bo=zeros(N_EMBD),
        )

    return dict(
        byte_embedding=nrm((VOCAB_SIZE, N_EMBD)),
        hash_tables={f"hash_{n}": nrm((HASH_TABLE_SIZE, N_EMBD))
                     for n in HASH_SIZES},
        blocks=[dict(
            ln1_w=ones(N_EMBD), ln1_b=zeros(N_EMBD),
            attn=attn_params(),
            ln2_w=ones(N_EMBD), ln2_b=zeros(N_EMBD),
            fc1_w=nrm((N_EMBD, 4 * N_EMBD)), fc1_b=zeros(4 * N_EMBD),
            fc2_w=nrm((4 * N_EMBD, N_EMBD)), fc2_b=zeros(N_EMBD),
        ) for _ in range(L_E)],
        cross_attn=dict(
            ln_q_w=ones(N_EMBD), ln_q_b=zeros(N_EMBD),
            ln_kv_w=ones(N_EMBD), ln_kv_b=zeros(N_EMBD),
            attn=attn_params(),
            proj_w=nrm((N_EMBD, N_EMBD)), proj_b=zeros(N_EMBD),
        ),
        ln_w=ones(N_EMBD), ln_b=zeros(N_EMBD),
    )


if __name__ == "__main__":
    B, T = 2, 8
    key = jax.random.PRNGKey(0)
    k_tok, k_par, k_ln, k_lw, k_lb = jax.random.split(key, 5)
    tokens = jax.random.randint(k_tok, (B, T), 0, VOCAB_SIZE, dtype=jnp.int32)
    params = init_params(k_par)

    # Resolve the fused-GELU probe once, outside of any jit trace.
    _erf_lowers_in_kernel()

    # Unit check: Pallas LayerNorm kernel vs pure-JAX reference.
    x_ln = jax.random.normal(k_ln, (B, T, N_EMBD), dtype=jnp.float32)
    ln_w = 1.0 + 0.05 * jax.random.normal(k_lw, (N_EMBD,), dtype=jnp.float32)
    ln_b = 0.05 * jax.random.normal(k_lb, (N_EMBD,), dtype=jnp.float32)
    ln_out = jax.block_until_ready(layer_norm(x_ln, ln_w, ln_b))
    ln_ref = _ln_ref(x_ln, ln_w, ln_b)
    assert bool(jnp.allclose(ln_out, ln_ref, atol=1e-4, rtol=1e-4)), \
        "layer_norm mismatch vs reference"

    # Full LocalEncoder forward (fused Pallas kernels) vs pure-JAX reference.
    out = jax.block_until_ready(jax.jit(local_encoder)(tokens, params))
    ref = jax.block_until_ready(jax.jit(local_encoder_ref)(tokens, params))

    assert out.shape == (B, T // PATCH_SIZE, N_EMBD)
    assert bool(jnp.all(jnp.isfinite(out)))
    assert bool(jnp.allclose(out, ref, atol=2e-2, rtol=2e-2)), (
        "LocalEncoder mismatch vs reference, max abs err "
        f"{float(jnp.max(jnp.abs(out - ref)))}")

    print("KERNEL_OK")
</pallas_src>

<mosaic_0001>
module attributes {stable_mosaic.version = 11 : i64} {
  func.func @_erf_probe_kernel(%arg0: memref<8x128xf32, #tpu.memory_space<vmem>>, %arg1: memref<8x128xf32, #tpu.memory_space<vmem>>) attributes {dimension_semantics = [], scalar_prefetch = 0 : i64, scratch_operands = 0 : i64, tpu.core_type = #tpu.core_type<tc>} {
    %c0 = arith.constant 0 : index
    %c0_0 = arith.constant 0 : index
    %0 = vector.load %arg0[%c0, %c0_0] : memref<8x128xf32, #tpu.memory_space<vmem>>, vector<8x128xf32>
    %1 = math.erf %0 : vector<8x128xf32>
    %c0_1 = arith.constant 0 : index
    %c0_2 = arith.constant 0 : index
    %2 = vector.load %arg1[%c0_1, %c0_2] : memref<8x128xf32, #tpu.memory_space<vmem>>, vector<8x128xf32>
    tpu.vector_store %arg1[%c0_1, %c0_2], %1 {strides = array<i32>} : memref<8x128xf32, #tpu.memory_space<vmem>>, vector<8x128xf32>,
    return
  }
}

module attributes {stable_mosaic.version = 11 : i64} {
  func.func @_layernorm_kernel(%arg0: i32, %arg1: memref<16x128xf32, #tpu.memory_space<vmem>>, %arg2: memref<1x128xf32, #tpu.memory_space<vmem>>, %arg3: memref<1x128xf32, #tpu.memory_space<vmem>>, %arg4: memref<16x128xf32, #tpu.memory_space<vmem>>) attributes {dimension_semantics = [#tpu.dimension_semantics<parallel>], iteration_bounds = array<i64: 1>, scalar_prefetch = 0 : i64, scratch_operands = 0 : i64, tpu.core_type = #tpu.core_type<tc>, window_params = [{transform_indices = @transform_0, window_bounds = array<i64: 16, 128>}, {pipeline_mode = #tpu.pipeline_mode<synchronous>, transform_indices = @transform_1, window_bounds = array<i64: 1, 128>}, {pipeline_mode = #tpu.pipeline_mode<synchronous>, transform_indices = @transform_2, window_bounds = array<i64: 1, 128>}, {transform_indices = @transform_3, window_bounds = array<i64: 16, 128>}]} {
    %c0 = arith.constant 0 : index
    %c0_0 = arith.constant 0 : index
    %0 = vector.load %arg1[%c0, %c0_0] : memref<16x128xf32, #tpu.memory_space<vmem>>, vector<16x128xf32>
    %cst = arith.constant dense<0.000000e+00> : vector<16xf32>
    %1 = vector.multi_reduction <add>, %0, %cst [1] : vector<16x128xf32> to vector<16xf32>
    %2 = vector.shape_cast %1 : vector<16xf32> to vector<16x1xf32>
    %cst_1 = arith.constant 1.280000e+02 : f32
    %3 = vector.broadcast %cst_1 : f32 to vector<16x1xf32>
    %4 = arith.divf %2, %3 : vector<16x1xf32>
    %5 = vector.broadcast %4 : vector<16x1xf32> to vector<16x128xf32>
    %6 = arith.subf %0, %5 : vector<16x128xf32>
    %7 = arith.mulf %6, %6 : vector<16x128xf32>
    %cst_2 = arith.constant dense<0.000000e+00> : vector<16xf32>
    %8 = vector.multi_reduction <add>, %7, %cst_2 [1] : vector<16x128xf32> to vector<16xf32>
    %9 = vector.shape_cast %8 : vector<16xf32> to vector<16x1xf32>
    %cst_3 = arith.constant 1.280000e+02 : f32
    %10 = vector.broadcast %cst_3 : f32 to vector<16x1xf32>
    %11 = arith.divf %9, %10 : vector<16x1xf32>
    %cst_4 = arith.constant 9.99999974E-6 : f32
    %12 = vector.broadcast %cst_4 : f32 to vector<16x1xf32>
    %13 = arith.addf %11, %12 : vector<16x1xf32>
    %14 = math.rsqrt %13 : vector<16x1xf32>
    %15 = vector.broadcast %14 : vector<16x1xf32> to vector<16x128xf32>
    %16 = arith.mulf %6, %15 : vector<16x128xf32>
    %c0_5 = arith.constant 0 : index
    %c0_6 = arith.constant 0 : index
    %17 = vector.load %arg2[%c0_5, %c0_6] : memref<1x128xf32, #tpu.memory_space<vmem>>, vector<1x128xf32>
    %18 = vector.broadcast %17 : vector<1x128xf32> to vector<16x128xf32>
    %19 = arith.mulf %16, %18 : vector<16x128xf32>
    %c0_7 = arith.constant 0 : index
    %c0_8 = arith.constant 0 : index
    %20 = vector.load %arg3[%c0_7, %c0_8] : memref<1x128xf32, #tpu.memory_space<vmem>>, vector<1x128xf32>
    %21 = vector.broadcast %20 : vector<1x128xf32> to vector<16x128xf32>
    %22 = arith.addf %19, %21 : vector<16x128xf32>
    %c0_9 = arith.constant 0 : index
    %c0_10 = arith.constant 0 : index
    %23 = vector.load %arg4[%c0_9, %c0_10] : memref<16x128xf32, #tpu.memory_space<vmem>>, vector<16x128xf32>
    tpu.vector_store %arg4[%c0_9, %c0_10], %22 {strides = array<i32>} : memref<16x128xf32, #tpu.memory_space<vmem>>, vector<16x128xf32>,
    return
  }
  func.func @transform_0(%arg0: i32) -> (i32, i32) {
    %c0_i32 = arith.constant 0 : i32
    %c0_i32_0 = arith.constant 0 : i32
    return %arg0, %c0_i32 : i32, i32
  }
  func.func @transform_1(%arg0: i32) -> (i32, i32) {
    %c0_i32 = arith.constant 0 : i32
    %c0_i32_0 = arith.constant 0 : i32
    %c0_i32_1 = arith.constant 0 : i32
    return %c0_i32, %c0_i32_0 : i32, i32
  }
  func.func @transform_2(%arg0: i32) -> (i32, i32) {
    %c0_i32 = arith.constant 0 : i32
    %c0_i32_0 = arith.constant 0 : i32
    %c0_i32_1 = arith.constant 0 : i32
    return %c0_i32, %c0_i32_0 : i32, i32
  }
  func.func @transform_3(%arg0: i32) -> (i32, i32) {
    %c0_i32 = arith.constant 0 : i32
    %c0_i32_0 = arith.constant 0 : i32
    return %arg0, %c0_i32 : i32, i32
  }
}

</mosaic_0001>

<llo_original>
// kernel: tpu_custom_call.1
$region0: #{tpu_custom_call.1}
  #allocation0 [shape = 'u32[]', space=smem, size = 0x4, offset = 0x4, fixed_abs, tag = 'smem constant byte address 0x4 - core index']
  #allocation1 [shape = 'u32[72,128]{1,0:T(1,128)}', space=vmem, size = 0x9000, scoped, tag = 'internal scratch']
  %s0 = inlined_call_operand.hbm [shape: f32[8,128], index: 0, kind: input, shape index: {}]
  %s1 = inlined_call_operand.hbm [shape: f32[8,128], index: 1, kind: output, shape index: {}]
  %s2 = sld [smem:[#allocation0]]
  $region18: #{tpu_custom_call.1} parent=0
    _
  %s4 = ssub.s32 1, %s2
  %s5 = scalar_select 0, %s4, %s2
  $region1: #{tpu_custom_call.1} parent=0
    #allocation2 [shape = 'u8[4096]{0}', space=vmem, size = 0x1000, scoped, tag = 'input window, operand 0, single buffered']
    #allocation3 [shape = 's32[1]{0}', space=sflag, size = 0x4, scoped, tag = 'scoped memory for tpu_custom_call.1']
    #allocation4 [shape = 's32[1]{0}', space=sflag, size = 0x4, scoped, tag = 'scoped memory for tpu_custom_call.1']
    #allocation5 [shape = 'u8[4096]{0}', space=vmem, size = 0x1000, scoped, tag = 'output window, operand 0, single buffered']
    %6 = vsyncpa [#allocation3], 0
    %7 = vsyncpa [#allocation4], 0
    // Predicated region
    $region2: #{tpu_custom_call.1} parent=1 // pred_check
      _
    $region3: #{tpu_custom_call.1} parent=1 // pred_check_branch
      %9 = sbr.rel (0) target = $region5
    $region4: #{tpu_custom_call.1} parent=1 // pred_region
      %11 = vsyncadd [#allocation3], 0
      %s13 = sshll.u32 %s0, 4
      %s14 = int_to_ptr.hbm [resolvable:$true] %s13
      %s15 = sshll.u32 [#allocation2], 4
      %s16 = int_to_ptr.vmem [resolvable:$true] %s15
      %18 = dma.hbm_to_vmem [thread:$0]  %s14, 128, %s16, [#allocation3]
    $region5: #{tpu_custom_call.1} parent=1 // pred_fallthru
      _
    // Predicated region
    $region6: #{tpu_custom_call.1} parent=1 // pred_check
      _
    $region7: #{tpu_custom_call.1} parent=1 // pred_check_branch
      %20 = sbr.rel (0) target = $region9
    $region8: #{tpu_custom_call.1} parent=1 // pred_region
      %22 = dma.done [#allocation3], 128
    $region9: #{tpu_custom_call.1} parent=1 // pred_fallthru
      _
    %v23 = vld [vmem:[#allocation2] sm:$0xff]
    %v24 = vmul.f32 %v23, %v23
    %v25 = vmin.f32 16.0, %v24
    %v26 = vmul.f32 %v25, 2.1237322e-06
    %v27 = vadd.f32 %v26, 0.00028619796
    %v28 = vmul.f32 %v25, %v27
    %v29 = vadd.f32 %v28, 0.0036580483
    %v30 = vmul.f32 %v25, %v29
    %v31 = vadd.f32 %v30, 0.05243302
    %v32 = vmul.f32 %v25, %v31
    %v33 = vadd.f32 %v32, 0.18741608
    %v34 = vmul.f32 %v25, %v33
    %v35 = vadd.f32 %v34, 1.1283791
    %v36 = vmul.f32 %v23, %v35
    %v37 = vmul.f32 %v25, 3.8918573e-05
    %v38 = vadd.f32 %v37, 0.001143296
    %v39 = vmul.f32 %v25, %v38
    %v40 = vadd.f32 %v39, 0.014752088
    %v41 = vmul.f32 %v25, %v40
    %v42 = vadd.f32 %v41, 0.112945676
    %v43 = vmul.f32 %v25, %v42
    %v44 = vadd.f32 %v43, 0.4994258
    %v45 = vmul.f32 %v25, %v44
    %v46 = vadd.f32 %v45, 1.0
    %v47 = vrcp.pop %v46
    %v48 = vmul.f32 %v46, %v47
    %v49 = vsub.f32 1.0, %v48
    %v50 = vmul.f32 %v47, %v49
    %v51 = vadd.f32 %v47, %v50
    %vm52 = vweird.f32 %v46
    %vm53 = vweird.f32 %v47
    %vm54 = vmor %vm52, %vm53
    %v55 = vsel %vm54, %v47, %v51
    %v56 = vand.u32 2147483647, %v46
    %vm57 = vcmp.eq.f32.partialorder %v56, 8.507059e+37
    %v58 = vand.u32 %v46, 2147483648
    %v59 = vor.u32 1.1754944e-38, %v58
    %v60 = vsel %vm57, %v59, %v55
    %v61 = vmul.f32 %v36, %v60
    %v62 = vmin.f32 %v61, 1.0
    %v63 = vmax.f32 %v62, -1.0
    %64 = vst [vmem:[#allocation5] sm:$0xff] %v63
    // Predicated region
    $region10: #{tpu_custom_call.1} parent=1 // pred_check
      _
    $region11: #{tpu_custom_call.1} parent=1 // pred_check_branch
      %66 = sbr.rel (0) target = $region13
    $region12: #{tpu_custom_call.1} parent=1 // pred_region
      %68 = vsyncadd [#allocation4], 0
      %s70 = sshll.u32 [#allocation5], 4
      %s71 = int_to_ptr.vmem [resolvable:$true] %s70
      %s72 = sshll.u32 %s1, 4
      %s73 = int_to_ptr.hbm [resolvable:$true] %s72
      %75 = dma.vmem_to_hbm [thread:$0]  %s71, 128, %s73, [#allocation4]
    $region13: #{tpu_custom_call.1} parent=1 // pred_fallthru
      _
    // Predicated region
    $region14: #{tpu_custom_call.1} parent=1 // pred_check
      _
    $region15: #{tpu_custom_call.1} parent=1 // pred_check_branch
      %77 = sbr.rel (0) target = $region17
    $region16: #{tpu_custom_call.1} parent=1 // pred_region
      %79 = dma.done [#allocation4], 128
    $region17: #{tpu_custom_call.1} parent=1 // pred_fallthru
      _
    %80 = vsyncpa [#allocation3], 1
    %81 = vsyncpa [#allocation4], 1

// kernel: tpu_custom_call.1
$region0: #{tpu_custom_call.1}
  #allocation0 [shape = 'u32[]', space=smem, size = 0x4, offset = 0x4, fixed_abs, tag = 'smem constant byte address 0x4 - core index']
  #allocation1 [shape = 'u32[72,128]{1,0:T(1,128)}', space=vmem, size = 0x9000, scoped, tag = 'internal scratch']
  %s0 = inlined_call_operand.hbm [shape: f32[16,128], index: 0, kind: input, shape index: {}]
  %s1 = inlined_call_operand.hbm [shape: f32[1,128], index: 1, kind: input, shape index: {}]
  %s2 = inlined_call_operand.vmem [shape: f32[1,128], index: 2, kind: input, shape index: {}]
  %s3 = inlined_call_operand.hbm [shape: f32[16,128], index: 3, kind: output, shape index: {}]
  %s4 = sld [smem:[#allocation0]]
  $region30: #{tpu_custom_call.1} parent=0
    _
  %s6 = ssub.s32 1, %s4
  %s7 = scalar_select 0, %s6, %s4
  $region1: #{tpu_custom_call.1} parent=0
    #allocation2 [shape = 'u8[8192]{0}', space=vmem, size = 0x2000, scoped, tag = 'input window, operand 0, single buffered']
    #allocation3 [shape = 's32[1]{0}', space=sflag, size = 0x4, scoped, tag = 'scoped memory for tpu_custom_call.1']
    #allocation4 [shape = 's32[1]{0}', space=sflag, size = 0x4, scoped, tag = 'scoped memory for tpu_custom_call.1']
    #allocation5 [shape = 'u8[512]{0}', space=vmem, size = 0x400, scoped, tag = 'input window, operand 1, single buffered']
    #allocation6 [shape = 's32[1]{0}', space=sflag, size = 0x4, scoped, tag = 'scoped memory for tpu_custom_call.1']
    #allocation7 [shape = 'u8[8192]{0}', space=vmem, size = 0x2000, scoped, tag = 'output window, operand 0, single buffered']
    %8 = vsyncpa [#allocation3], 0
    %9 = vsyncpa [#allocation6], 0
    %10 = vsyncpa [#allocation4], 0
    // Predicated region
    $region2: #{tpu_custom_call.1} parent=1 // pred_check
      _
    $region3: #{tpu_custom_call.1} parent=1 // pred_check_branch
      %12 = sbr.rel (0) target = $region5
    $region4: #{tpu_custom_call.1} parent=1 // pred_region
      %14 = vsyncadd [#allocation3], 0
      %s15 = sshll.u32 %s0, 4
      %s16 = int_to_ptr.hbm [resolvable:$true] %s15
      %s17 = sshll.u32 [#allocation2], 4
      %s18 = int_to_ptr.vmem [resolvable:$true] %s17
      %23 = dma.hbm_to_vmem [thread:$0]  %s16, 256, %s18, [#allocation3], 128, 128, 8
    $region5: #{tpu_custom_call.1} parent=1 // pred_fallthru
      _
    // Predicated region
    $region6: #{tpu_custom_call.1} parent=1 // pred_check
      _
    $region7: #{tpu_custom_call.1} parent=1 // pred_check_branch
      %25 = sbr.rel (0) target = $region9
    $region8: #{tpu_custom_call.1} parent=1 // pred_region
      %27 = vsyncadd [#allocation6], 0
      %s29 = sshll.u32 %s1, 4
      %s30 = int_to_ptr.hbm [resolvable:$true] %s29
      %s31 = sshll.u32 [#allocation5], 4
      %s32 = int_to_ptr.vmem [resolvable:$true] %s31
      %34 = dma.hbm_to_vmem [thread:$0]  %s30, 16, %s32, [#allocation6]
    $region9: #{tpu_custom_call.1} parent=1 // pred_fallthru
      _
    // Predicated region
    $region10: #{tpu_custom_call.1} parent=1 // pred_check
      _
    $region11: #{tpu_custom_call.1} parent=1 // pred_check_branch
      %36 = sbr.rel (0) target = $region13
    $region12: #{tpu_custom_call.1} parent=1 // pred_region
      _
    $region13: #{tpu_custom_call.1} parent=1 // pred_fallthru
      _
    // Predicated region
    $region14: #{tpu_custom_call.1} parent=1 // pred_check
      _
    $region15: #{tpu_custom_call.1} parent=1 // pred_check_branch
      %38 = sbr.rel (0) target = $region17
    $region16: #{tpu_custom_call.1} parent=1 // pred_region
      %40 = dma.done [#allocation3], 256
    $region17: #{tpu_custom_call.1} parent=1 // pred_fallthru
      _
    // Predicated region
    $region18: #{tpu_custom_call.1} parent=1 // pred_check
      _
    $region19: #{tpu_custom_call.1} parent=1 // pred_check_branch
      %42 = sbr.rel (0) target = $region21
    $region20: #{tpu_custom_call.1} parent=1 // pred_region
      %44 = dma.done [#allocation6], 16
    $region21: #{tpu_custom_call.1} parent=1 // pred_fallthru
      _
    %v45 = vld [vmem:[#allocation2] sm:$0xff]
    %v46 = vld [vmem:[#allocation2 + $0x8] sm:$0xff]
    %47 = vadd.xlane.f32.xlu0 %v45
    %v48 = vpop.xlane.xlu0 %47
    %49 = vadd.xlane.f32.xlu0 %v46
    %v50 = vpop.xlane.xlu0 %49
    %v51 = vrcp.pop 128.0
    %v52 = vmul.f32 128.0, %v51
    %v53 = vsub.f32 1.0, %v52
    %v54 = vmul.f32 %v51, %v53
    %v55 = vadd.f32 %v51, %v54
    %vm56 = vweird.f32 %v51
    %v57 = vsel %vm56, %v51, %v55
    %v58 = vmul.f32 %v48, %v57
    %v59 = vmul.f32 %v50, %v57
    %v60 = vsub.f32 %v45, %v58
    %v61 = vsub.f32 %v46, %v59
    %v62 = vmul.f32 %v60, %v60
    %v63 = vmul.f32 %v61, %v61
    %64 = vadd.xlane.f32.xlu0 %v62
    %v65 = vpop.xlane.xlu0 %64
    %66 = vadd.xlane.f32.xlu0 %v63
    %v67 = vpop.xlane.xlu0 %66
    %v68 = vmul.f32 %v65, %v57
    %v69 = vmul.f32 %v67, %v57
    %v70 = vadd.f32 %v68, 1e-05
    %v71 = vadd.f32 %v69, 1e-05
    %v72 = vrsqrt.pop %v70
    %v73 = vmul.f32 %v72, %v70
    %v74 = vmul.f32 %v73, %v72
    %v75 = vmul.f32 0.5, %v74
    %v76 = vsub.f32 1.5, %v75
    %v77 = vmul.f32 %v72, %v76
    %vm78 = vweird.f32 %v70
    %vm79 = vweird.f32 %v72
    %vm80 = vmor %vm78, %vm79
    %v81 = vsel %vm80, %v72, %v77
    %v82 = vrsqrt.pop %v71
    %v83 = vmul.f32 %v82, %v71
    %v84 = vmul.f32 %v83, %v82
    %v85 = vmul.f32 0.5, %v84
    %v86 = vsub.f32 1.5, %v85
    %v87 = vmul.f32 %v82, %v86
    %vm88 = vweird.f32 %v71
    %vm89 = vweird.f32 %v82
    %vm90 = vmor %vm88, %vm89
    %v91 = vsel %vm90, %v82, %v87
    %v92 = vmul.f32 %v60, %v81
    %v93 = vmul.f32 %v61, %v91
    %v94 = vld [vmem:[#allocation5] sm:$0x1]
    %v96 = vperm.slane %v94, 0
    %v98 = vmul.f32 %v92, %v96
    %v99 = vmul.f32 %v93, %v96
    %v100 = vld [vmem:[%s2] sm:$0x1]
    %v102 = vperm.slane %v100, 0
    %v104 = vadd.f32 %v98, %v102
    %v105 = vadd.f32 %v99, %v102
    %106 = vst [vmem:[#allocation7] sm:$0xff] %v104
    %107 = vst [vmem:[#allocation7 + $0x8] sm:$0xff] %v105
    // Predicated region
    $region22: #{tpu_custom_call.1} parent=1 // pred_check
      _
    $region23: #{tpu_custom_call.1} parent=1 // pred_check_branch
      %109 = sbr.rel (0) target = $region25
    $region24: #{tpu_custom_call.1} parent=1 // pred_region
      %111 = vsyncadd [#allocation4], 0
      %s112 = sshll.u32 [#allocation7], 4
      %s113 = int_to_ptr.vmem [resolvable:$true] %s112
      %s114 = sshll.u32 %s3, 4
      %s115 = int_to_ptr.hbm [resolvable:$true] %s114
      %120 = dma.vmem_to_hbm [thread:$0]  %s113, 256, %s115, [#allocation4], 128, 128, 8
    $region25: #{tpu_custom_call.1} parent=1 // pred_fallthru
      _
    // Predicated region
    $region26: #{tpu_custom_call.1} parent=1 // pred_check
      _
    $region27: #{tpu_custom_call.1} parent=1 // pred_check_branch
      %122 = sbr.rel (0) target = $region29
    $region28: #{tpu_custom_call.1} parent=1 // pred_region
      %124 = dma.done [#allocation4], 256
    $region29: #{tpu_custom_call.1} parent=1 // pred_fallthru
      _
    %125 = vsyncpa [#allocation3], 1
    %126 = vsyncpa [#allocation6], 1
    %127 = vsyncpa [#allocation4], 1

</llo_original>
